<compile_context>
chip_gen: v7x
topology: tpu7x:2x2x1
jax: 0.10.0
libtpu: 0.0.40
codegen_flags: <defaults>
</compile_context>

<pallas_src>
import math
import jax
import jax.numpy as jnp
from jax.experimental import pallas as pl
from jax.experimental.pallas import tpu as pltpu

HIDDEN = 10
LANES = 128


def _cdiv(a, b):
    return -(-a // b)


def _round_up(a, b):
    return _cdiv(a, b) * b


def mlp_kernel(params_ref, x_ref, o_ref):
    # params_ref: SMEM f32[31] (scalar prefetch) = [w1(10), b1(10), w2(10), b2(1)]
    # x_ref, o_ref: VMEM f32[(tm, 128)] lane-dense batch tiles.
    x = x_ref[...]

    # Hidden unit 0 initializes the accumulator (no bias splat, no extra add pass).
    acc = jnp.maximum(x * params_ref[0] + params_ref[HIDDEN], 0.0) * params_ref[2 * HIDDEN]
    # Statically unrolled over the remaining 9 hidden units (pure VALU work).
    for j in range(1, HIDDEN):
        h = jnp.maximum(x * params_ref[j] + params_ref[HIDDEN + j], 0.0)
        acc = acc + h * params_ref[2 * HIDDEN + j]

    # sigmoid(z) = 0.5 * tanh(z / 2) + 0.5  -- single EUP transcendental, stable by construction.
    # fc2 bias folded into the tanh argument via a scalar (0.5 * b2 computed on the scalar unit).
    half_b2 = 0.5 * params_ref[3 * HIDDEN]
    t = jnp.tanh(0.5 * acc + half_b2)
    o_ref[...] = 0.5 * t + 0.5


def sigmoid_fitting_forward(x, w1, b1, w2, b2, *, tile_rows=1024):
    """x: (N, 1) f32; w1: (10, 1); b1: (10,); w2: (1, 10); b2: (1,). Returns (N, 1) f32."""
    N = x.shape[0]

    # Pack all 31 parameters into one small scalar-prefetch array (lives in SMEM).
    params = jnp.concatenate(
        [w1.reshape(-1), b1.reshape(-1), w2.reshape(-1), b2.reshape(-1)]
    ).astype(jnp.float32)

    # Lane-dense layout: flatten the batch to (rows, 128) with minimal padding.
    rows_min = _round_up(max(1, _cdiv(N, LANES)), 8)          # rows needed, multiple of 8
    # Balanced block count; force >= 2 grid steps for moderate batches (v7x megacore).
    n_blocks = _cdiv(rows_min, tile_rows)
    if rows_min >= 16:
        n_blocks = max(n_blocks, 2)
    tm = _round_up(_cdiv(rows_min, n_blocks), 8)              # block rows, multiple of 8
    rows = tm * n_blocks                                      # total rows (at most +8/block waste)
    n_pad = rows * LANES

    xf = x.reshape(-1).astype(jnp.float32)
    if n_pad != N:
        # TODO(synk): for very large unaligned N, a manual-DMA tail-masked variant would avoid
        # this extra HBM pass; for aligned N this branch is skipped entirely.
        xf = jnp.pad(xf, (0, n_pad - N))
    x2 = xf.reshape(rows, LANES)

    out2 = pl.pallas_call(
        mlp_kernel,
        out_shape=jax.ShapeDtypeStruct((rows, LANES), jnp.float32),
        grid_spec=pltpu.PrefetchScalarGridSpec(
            num_scalar_prefetch=1,                            # params -> SMEM, once, before grid
            grid=(n_blocks,),
            in_specs=[pl.BlockSpec((tm, LANES), lambda i, p: (i, 0))],
            out_specs=pl.BlockSpec((tm, LANES), lambda i, p: (i, 0)),
        ),
        compiler_params=pltpu.CompilerParams(
            dimension_semantics=("parallel",),
        ),
    )(params, x2)

    out_flat = out2.reshape(-1)
    if n_pad != N:
        out_flat = out_flat[:N]
    return out_flat.reshape(N, 1)


def init_params(key):
    """Deterministic init mimicking PyTorch nn.Linear default (U[-1/sqrt(fan_in), 1/sqrt(fan_in)])."""
    k1, k2, k3, k4 = jax.random.split(key, 4)
    bound1 = 1.0 / math.sqrt(1.0)    # fc1 fan_in = 1
    bound2 = 1.0 / math.sqrt(10.0)   # fc2 fan_in = 10
    w1 = jax.random.uniform(k1, (10, 1), jnp.float32, -bound1, bound1)
    b1 = jax.random.uniform(k2, (10,),   jnp.float32, -bound1, bound1)
    w2 = jax.random.uniform(k3, (1, 10), jnp.float32, -bound2, bound2)
    b2 = jax.random.uniform(k4, (1,),    jnp.float32, -bound2, bound2)
    return w1, b1, w2, b2


def _reference(x, w1, b1, w2, b2):
    return jax.nn.sigmoid(jnp.maximum(x @ w1.T + b1, 0.0) @ w2.T + b2)


if __name__ == "__main__":
    key = jax.random.PRNGKey(0)
    pkey, xkey1, xkey2 = jax.random.split(key, 3)
    w1, b1, w2, b2 = init_params(pkey)

    # Small batch of scalar inputs, shape (N, 1) just like the PyTorch module expects.
    N = 8
    x = jax.random.normal(xkey1, (N, 1), jnp.float32)
    out = jax.block_until_ready(sigmoid_fitting_forward(x, w1, b1, w2, b2))
    ref = _reference(x, w1, b1, w2, b2)
    assert out.shape == (N, 1)
    assert jnp.allclose(out, ref, atol=1e-5, rtol=1e-5), (out, ref)

    # Second case exercising the multi-block (>=2 grid steps) + padding-trim path.
    N2 = 2000
    x2 = jax.random.normal(xkey2, (N2, 1), jnp.float32)
    out2 = jax.block_until_ready(sigmoid_fitting_forward(x2, w1, b1, w2, b2))
    ref2 = _reference(x2, w1, b1, w2, b2)
    assert out2.shape == (N2, 1)
    assert jnp.allclose(out2, ref2, atol=1e-5, rtol=1e-5)

    print("KERNEL_OK")
</pallas_src>

<mosaic_0001>
module attributes {stable_mosaic.version = 11 : i64} {
  func.func @mlp_kernel(%arg0: i32, %arg1: memref<31xf32, #tpu.memory_space<smem>>, %arg2: memref<8x128xf32, #tpu.memory_space<vmem>>, %arg3: memref<8x128xf32, #tpu.memory_space<vmem>>) attributes {dimension_semantics = [#tpu.dimension_semantics<parallel>], iteration_bounds = array<i64: 1>, scalar_prefetch = 1 : i64, scratch_operands = 0 : i64, tpu.core_type = #tpu.core_type<tc>, window_params = [{transform_indices = @transform_0, window_bounds = array<i64: 8, 128>}, {transform_indices = @transform_1, window_bounds = array<i64: 8, 128>}]} {
    %c0 = arith.constant 0 : index
    %c0_0 = arith.constant 0 : index
    %0 = vector.load %arg2[%c0, %c0_0] : memref<8x128xf32, #tpu.memory_space<vmem>>, vector<8x128xf32>
    %c0_1 = arith.constant 0 : index
    %1 = memref.load %arg1[%c0_1] : memref<31xf32, #tpu.memory_space<smem>>
    %2 = vector.broadcast %1 : f32 to vector<8x128xf32>
    %3 = arith.mulf %0, %2 : vector<8x128xf32>
    %c10 = arith.constant 10 : index
    %4 = memref.load %arg1[%c10] : memref<31xf32, #tpu.memory_space<smem>>
    %5 = vector.broadcast %4 : f32 to vector<8x128xf32>
    %6 = arith.addf %3, %5 : vector<8x128xf32>
    %cst = arith.constant 0.000000e+00 : f32
    %7 = vector.broadcast %cst : f32 to vector<8x128xf32>
    %8 = arith.maximumf %6, %7 : vector<8x128xf32>
    %c20 = arith.constant 20 : index
    %9 = memref.load %arg1[%c20] : memref<31xf32, #tpu.memory_space<smem>>
    %10 = vector.broadcast %9 : f32 to vector<8x128xf32>
    %11 = arith.mulf %8, %10 : vector<8x128xf32>
    %c1 = arith.constant 1 : index
    %12 = memref.load %arg1[%c1] : memref<31xf32, #tpu.memory_space<smem>>
    %13 = vector.broadcast %12 : f32 to vector<8x128xf32>
    %14 = arith.mulf %0, %13 : vector<8x128xf32>
    %c11 = arith.constant 11 : index
    %15 = memref.load %arg1[%c11] : memref<31xf32, #tpu.memory_space<smem>>
    %16 = vector.broadcast %15 : f32 to vector<8x128xf32>
    %17 = arith.addf %14, %16 : vector<8x128xf32>
    %cst_2 = arith.constant 0.000000e+00 : f32
    %18 = vector.broadcast %cst_2 : f32 to vector<8x128xf32>
    %19 = arith.maximumf %17, %18 : vector<8x128xf32>
    %c21 = arith.constant 21 : index
    %20 = memref.load %arg1[%c21] : memref<31xf32, #tpu.memory_space<smem>>
    %21 = vector.broadcast %20 : f32 to vector<8x128xf32>
    %22 = arith.mulf %19, %21 : vector<8x128xf32>
    %23 = arith.addf %11, %22 : vector<8x128xf32>
    %c2 = arith.constant 2 : index
    %24 = memref.load %arg1[%c2] : memref<31xf32, #tpu.memory_space<smem>>
    %25 = vector.broadcast %24 : f32 to vector<8x128xf32>
    %26 = arith.mulf %0, %25 : vector<8x128xf32>
    %c12 = arith.constant 12 : index
    %27 = memref.load %arg1[%c12] : memref<31xf32, #tpu.memory_space<smem>>
    %28 = vector.broadcast %27 : f32 to vector<8x128xf32>
    %29 = arith.addf %26, %28 : vector<8x128xf32>
    %cst_3 = arith.constant 0.000000e+00 : f32
    %30 = vector.broadcast %cst_3 : f32 to vector<8x128xf32>
    %31 = arith.maximumf %29, %30 : vector<8x128xf32>
    %c22 = arith.constant 22 : index
    %32 = memref.load %arg1[%c22] : memref<31xf32, #tpu.memory_space<smem>>
    %33 = vector.broadcast %32 : f32 to vector<8x128xf32>
    %34 = arith.mulf %31, %33 : vector<8x128xf32>
    %35 = arith.addf %23, %34 : vector<8x128xf32>
    %c3 = arith.constant 3 : index
    %36 = memref.load %arg1[%c3] : memref<31xf32, #tpu.memory_space<smem>>
    %37 = vector.broadcast %36 : f32 to vector<8x128xf32>
    %38 = arith.mulf %0, %37 : vector<8x128xf32>
    %c13 = arith.constant 13 : index
    %39 = memref.load %arg1[%c13] : memref<31xf32, #tpu.memory_space<smem>>
    %40 = vector.broadcast %39 : f32 to vector<8x128xf32>
    %41 = arith.addf %38, %40 : vector<8x128xf32>
    %cst_4 = arith.constant 0.000000e+00 : f32
    %42 = vector.broadcast %cst_4 : f32 to vector<8x128xf32>
    %43 = arith.maximumf %41, %42 : vector<8x128xf32>
    %c23 = arith.constant 23 : index
    %44 = memref.load %arg1[%c23] : memref<31xf32, #tpu.memory_space<smem>>
    %45 = vector.broadcast %44 : f32 to vector<8x128xf32>
    %46 = arith.mulf %43, %45 : vector<8x128xf32>
    %47 = arith.addf %35, %46 : vector<8x128xf32>
    %c4 = arith.constant 4 : index
    %48 = memref.load %arg1[%c4] : memref<31xf32, #tpu.memory_space<smem>>
    %49 = vector.broadcast %48 : f32 to vector<8x128xf32>
    %50 = arith.mulf %0, %49 : vector<8x128xf32>
    %c14 = arith.constant 14 : index
    %51 = memref.load %arg1[%c14] : memref<31xf32, #tpu.memory_space<smem>>
    %52 = vector.broadcast %51 : f32 to vector<8x128xf32>
    %53 = arith.addf %50, %52 : vector<8x128xf32>
    %cst_5 = arith.constant 0.000000e+00 : f32
    %54 = vector.broadcast %cst_5 : f32 to vector<8x128xf32>
    %55 = arith.maximumf %53, %54 : vector<8x128xf32>
    %c24 = arith.constant 24 : index
    %56 = memref.load %arg1[%c24] : memref<31xf32, #tpu.memory_space<smem>>
    %57 = vector.broadcast %56 : f32 to vector<8x128xf32>
    %58 = arith.mulf %55, %57 : vector<8x128xf32>
    %59 = arith.addf %47, %58 : vector<8x128xf32>
    %c5 = arith.constant 5 : index
    %60 = memref.load %arg1[%c5] : memref<31xf32, #tpu.memory_space<smem>>
    %61 = vector.broadcast %60 : f32 to vector<8x128xf32>
    %62 = arith.mulf %0, %61 : vector<8x128xf32>
    %c15 = arith.constant 15 : index
    %63 = memref.load %arg1[%c15] : memref<31xf32, #tpu.memory_space<smem>>
    %64 = vector.broadcast %63 : f32 to vector<8x128xf32>
    %65 = arith.addf %62, %64 : vector<8x128xf32>
    %cst_6 = arith.constant 0.000000e+00 : f32
    %66 = vector.broadcast %cst_6 : f32 to vector<8x128xf32>
    %67 = arith.maximumf %65, %66 : vector<8x128xf32>
    %c25 = arith.constant 25 : index
    %68 = memref.load %arg1[%c25] : memref<31xf32, #tpu.memory_space<smem>>
    %69 = vector.broadcast %68 : f32 to vector<8x128xf32>
    %70 = arith.mulf %67, %69 : vector<8x128xf32>
    %71 = arith.addf %59, %70 : vector<8x128xf32>
    %c6 = arith.constant 6 : index
    %72 = memref.load %arg1[%c6] : memref<31xf32, #tpu.memory_space<smem>>
    %73 = vector.broadcast %72 : f32 to vector<8x128xf32>
    %74 = arith.mulf %0, %73 : vector<8x128xf32>
    %c16 = arith.constant 16 : index
    %75 = memref.load %arg1[%c16] : memref<31xf32, #tpu.memory_space<smem>>
    %76 = vector.broadcast %75 : f32 to vector<8x128xf32>
    %77 = arith.addf %74, %76 : vector<8x128xf32>
    %cst_7 = arith.constant 0.000000e+00 : f32
    %78 = vector.broadcast %cst_7 : f32 to vector<8x128xf32>
    %79 = arith.maximumf %77, %78 : vector<8x128xf32>
    %c26 = arith.constant 26 : index
    %80 = memref.load %arg1[%c26] : memref<31xf32, #tpu.memory_space<smem>>
    %81 = vector.broadcast %80 : f32 to vector<8x128xf32>
    %82 = arith.mulf %79, %81 : vector<8x128xf32>
    %83 = arith.addf %71, %82 : vector<8x128xf32>
    %c7 = arith.constant 7 : index
    %84 = memref.load %arg1[%c7] : memref<31xf32, #tpu.memory_space<smem>>
    %85 = vector.broadcast %84 : f32 to vector<8x128xf32>
    %86 = arith.mulf %0, %85 : vector<8x128xf32>
    %c17 = arith.constant 17 : index
    %87 = memref.load %arg1[%c17] : memref<31xf32, #tpu.memory_space<smem>>
    %88 = vector.broadcast %87 : f32 to vector<8x128xf32>
    %89 = arith.addf %86, %88 : vector<8x128xf32>
    %cst_8 = arith.constant 0.000000e+00 : f32
    %90 = vector.broadcast %cst_8 : f32 to vector<8x128xf32>
    %91 = arith.maximumf %89, %90 : vector<8x128xf32>
    %c27 = arith.constant 27 : index
    %92 = memref.load %arg1[%c27] : memref<31xf32, #tpu.memory_space<smem>>
    %93 = vector.broadcast %92 : f32 to vector<8x128xf32>
    %94 = arith.mulf %91, %93 : vector<8x128xf32>
    %95 = arith.addf %83, %94 : vector<8x128xf32>
    %c8 = arith.constant 8 : index
    %96 = memref.load %arg1[%c8] : memref<31xf32, #tpu.memory_space<smem>>
    %97 = vector.broadcast %96 : f32 to vector<8x128xf32>
    %98 = arith.mulf %0, %97 : vector<8x128xf32>
    %c18 = arith.constant 18 : index
    %99 = memref.load %arg1[%c18] : memref<31xf32, #tpu.memory_space<smem>>
    %100 = vector.broadcast %99 : f32 to vector<8x128xf32>
    %101 = arith.addf %98, %100 : vector<8x128xf32>
    %cst_9 = arith.constant 0.000000e+00 : f32
    %102 = vector.broadcast %cst_9 : f32 to vector<8x128xf32>
    %103 = arith.maximumf %101, %102 : vector<8x128xf32>
    %c28 = arith.constant 28 : index
    %104 = memref.load %arg1[%c28] : memref<31xf32, #tpu.memory_space<smem>>
    %105 = vector.broadcast %104 : f32 to vector<8x128xf32>
    %106 = arith.mulf %103, %105 : vector<8x128xf32>
    %107 = arith.addf %95, %106 : vector<8x128xf32>
    %c9 = arith.constant 9 : index
    %108 = memref.load %arg1[%c9] : memref<31xf32, #tpu.memory_space<smem>>
    %109 = vector.broadcast %108 : f32 to vector<8x128xf32>
    %110 = arith.mulf %0, %109 : vector<8x128xf32>
    %c19 = arith.constant 19 : index
    %111 = memref.load %arg1[%c19] : memref<31xf32, #tpu.memory_space<smem>>
    %112 = vector.broadcast %111 : f32 to vector<8x128xf32>
    %113 = arith.addf %110, %112 : vector<8x128xf32>
    %cst_10 = arith.constant 0.000000e+00 : f32
    %114 = vector.broadcast %cst_10 : f32 to vector<8x128xf32>
    %115 = arith.maximumf %113, %114 : vector<8x128xf32>
    %c29 = arith.constant 29 : index
    %116 = memref.load %arg1[%c29] : memref<31xf32, #tpu.memory_space<smem>>
    %117 = vector.broadcast %116 : f32 to vector<8x128xf32>
    %118 = arith.mulf %115, %117 : vector<8x128xf32>
    %119 = arith.addf %107, %118 : vector<8x128xf32>
    %c30 = arith.constant 30 : index
    %120 = memref.load %arg1[%c30] : memref<31xf32, #tpu.memory_space<smem>>
    %cst_11 = arith.constant 5.000000e-01 : f32
    %121 = arith.mulf %cst_11, %120 : f32
    %cst_12 = arith.constant 5.000000e-01 : f32
    %122 = vector.broadcast %cst_12 : f32 to vector<8x128xf32>
    %123 = arith.mulf %122, %119 : vector<8x128xf32>
    %124 = vector.broadcast %121 : f32 to vector<8x128xf32>
    %125 = arith.addf %123, %124 : vector<8x128xf32>
    %126 = math.tanh %125 : vector<8x128xf32>
    %cst_13 = arith.constant 5.000000e-01 : f32
    %127 = vector.broadcast %cst_13 : f32 to vector<8x128xf32>
    %128 = arith.mulf %127, %126 : vector<8x128xf32>
    %cst_14 = arith.constant 5.000000e-01 : f32
    %129 = vector.broadcast %cst_14 : f32 to vector<8x128xf32>
    %130 = arith.addf %128, %129 : vector<8x128xf32>
    %c0_15 = arith.constant 0 : index
    %c0_16 = arith.constant 0 : index
    %131 = vector.load %arg3[%c0_15, %c0_16] : memref<8x128xf32, #tpu.memory_space<vmem>>, vector<8x128xf32>
    tpu.vector_store %arg3[%c0_15, %c0_16], %130 {strides = array<i32>} : memref<8x128xf32, #tpu.memory_space<vmem>>, vector<8x128xf32>,
    return
  }
  func.func @transform_0(%arg0: i32, %arg1: memref<31xf32, #tpu.memory_space<smem>>) -> (i32, i32) {
    %c0_i32 = arith.constant 0 : i32
    %c0_i32_0 = arith.constant 0 : i32
    return %arg0, %c0_i32 : i32, i32
  }
  func.func @transform_1(%arg0: i32, %arg1: memref<31xf32, #tpu.memory_space<smem>>) -> (i32, i32) {
    %c0_i32 = arith.constant 0 : i32
    %c0_i32_0 = arith.constant 0 : i32
    return %arg0, %c0_i32 : i32, i32
  }
}

</mosaic_0001>

<llo_original>
// kernel: tpu_custom_call.1
$region0: #{tpu_custom_call.1}
  #allocation0 [shape = 'u32[]', space=smem, size = 0x4, offset = 0x4, fixed_abs, tag = 'smem constant byte address 0x4 - core index']
  #allocation1 [shape = 'u32[144,128]{1,0:T(1,128)}', space=vmem, size = 0x12000, scoped, tag = 'internal scratch']
  #allocation2 [shape = 's32[1]{0}', space=sflag, size = 0x4, scoped, tag = 'scoped memory for tpu_custom_call.1']
  #allocation3 [shape = 'u8[512]{0}', space=smem, size = 0x200, scoped, tag = 'prefetched SMEM operand 0']
  %s0 = inlined_call_operand.hbm [shape: f32[31], index: 0, kind: input, shape index: {}]
  %s1 = inlined_call_operand.hbm [shape: f32[8,128], index: 1, kind: input, shape index: {}]
  %s2 = inlined_call_operand.hbm [shape: f32[8,128], index: 2, kind: output, shape index: {}]
  %s3 = sld [smem:[#allocation0]]
  $region18: #{tpu_custom_call.1} parent=0
    _
  %s5 = ssub.s32 1, %s3
  %s6 = scalar_select 0, %s5, %s3
  %8 = dma.hbm_to_smem %s0, 16, [#allocation3], [#allocation2]
  %9 = dma.done [#allocation2], 16
  %10 = sfence
  $region1: #{tpu_custom_call.1} parent=0
    #allocation4 [shape = 'u8[4096]{0}', space=vmem, size = 0x1000, scoped, tag = 'input window, operand 1, single buffered']
    #allocation5 [shape = 's32[1]{0}', space=sflag, size = 0x4, scoped, tag = 'scoped memory for tpu_custom_call.1']
    #allocation6 [shape = 's32[1]{0}', space=sflag, size = 0x4, scoped, tag = 'scoped memory for tpu_custom_call.1']
    #allocation7 [shape = 'u8[4096]{0}', space=vmem, size = 0x1000, scoped, tag = 'output window, operand 0, single buffered']
    %11 = vsyncpa [#allocation5], 0
    %12 = vsyncpa [#allocation6], 0
    // Predicated region
    $region2: #{tpu_custom_call.1} parent=1 // pred_check
      _
    $region3: #{tpu_custom_call.1} parent=1 // pred_check_branch
      %14 = sbr.rel (0) target = $region5
    $region4: #{tpu_custom_call.1} parent=1 // pred_region
      %s16 = ssub.s32 128, 128
      %17 = vsyncadd [#allocation5], %s16
      %s19 = sshll.u32 [#allocation4], 4
      %s20 = int_to_ptr.vmem [resolvable:$true] %s19
      %22 = dma.hbm_to_vmem [thread:$0]  %s1, 128, %s20, [#allocation5]
    $region5: #{tpu_custom_call.1} parent=1 // pred_fallthru
      _
    // Predicated region
    $region6: #{tpu_custom_call.1} parent=1 // pred_check
      _
    $region7: #{tpu_custom_call.1} parent=1 // pred_check_branch
      %24 = sbr.rel (0) target = $region9
    $region8: #{tpu_custom_call.1} parent=1 // pred_region
      %25 = dma.done [#allocation5], 128
    $region9: #{tpu_custom_call.1} parent=1 // pred_fallthru
      _
    %v26 = vld [vmem:[#allocation4] sm:$0xff]
    %s27 = sld [smem:[#allocation3]]
    %v28 = vstv %s27
    %v29 = vmul.f32 %v26, %v28
    %s30 = sld [smem:[#allocation3 + $0xa]]
    %v31 = vstv %s30
    %v32 = vadd.f32 %v29, %v31
    %v33 = vmax.f32 %v32, 0.0
    %s34 = sld [smem:[#allocation3 + $0x14]]
    %v35 = vstv %s34
    %v36 = vmul.f32 %v33, %v35
    %s37 = sld [smem:[#allocation3 + $0x1]]
    %v38 = vstv %s37
    %v39 = vmul.f32 %v26, %v38
    %s40 = sld [smem:[#allocation3 + $0xb]]
    %v41 = vstv %s40
    %v42 = vadd.f32 %v39, %v41
    %v43 = vmax.f32 %v42, 0.0
    %s44 = sld [smem:[#allocation3 + $0x15]]
    %v45 = vstv %s44
    %v46 = vmul.f32 %v43, %v45
    %v47 = vadd.f32 %v36, %v46
    %s48 = sld [smem:[#allocation3 + $0x2]]
    %v49 = vstv %s48
    %v50 = vmul.f32 %v26, %v49
    %s51 = sld [smem:[#allocation3 + $0xc]]
    %v52 = vstv %s51
    %v53 = vadd.f32 %v50, %v52
    %v54 = vmax.f32 %v53, 0.0
    %s55 = sld [smem:[#allocation3 + $0x16]]
    %v56 = vstv %s55
    %v57 = vmul.f32 %v54, %v56
    %v58 = vadd.f32 %v47, %v57
    %s59 = sld [smem:[#allocation3 + $0x3]]
    %v60 = vstv %s59
    %v61 = vmul.f32 %v26, %v60
    %s62 = sld [smem:[#allocation3 + $0xd]]
    %v63 = vstv %s62
    %v64 = vadd.f32 %v61, %v63
    %v65 = vmax.f32 %v64, 0.0
    %s66 = sld [smem:[#allocation3 + $0x17]]
    %v67 = vstv %s66
    %v68 = vmul.f32 %v65, %v67
    %v69 = vadd.f32 %v58, %v68
    %s70 = sld [smem:[#allocation3 + $0x4]]
    %v71 = vstv %s70
    %v72 = vmul.f32 %v26, %v71
    %s73 = sld [smem:[#allocation3 + $0xe]]
    %v74 = vstv %s73
    %v75 = vadd.f32 %v72, %v74
    %v76 = vmax.f32 %v75, 0.0
    %s77 = sld [smem:[#allocation3 + $0x18]]
    %v78 = vstv %s77
    %v79 = vmul.f32 %v76, %v78
    %v80 = vadd.f32 %v69, %v79
    %s81 = sld [smem:[#allocation3 + $0x5]]
    %v82 = vstv %s81
    %v83 = vmul.f32 %v26, %v82
    %s84 = sld [smem:[#allocation3 + $0xf]]
    %v85 = vstv %s84
    %v86 = vadd.f32 %v83, %v85
    %v87 = vmax.f32 %v86, 0.0
    %s88 = sld [smem:[#allocation3 + $0x19]]
    %v89 = vstv %s88
    %v90 = vmul.f32 %v87, %v89
    %v91 = vadd.f32 %v80, %v90
    %s92 = sld [smem:[#allocation3 + $0x6]]
    %v93 = vstv %s92
    %v94 = vmul.f32 %v26, %v93
    %s95 = sld [smem:[#allocation3 + $0x10]]
    %v96 = vstv %s95
    %v97 = vadd.f32 %v94, %v96
    %v98 = vmax.f32 %v97, 0.0
    %s99 = sld [smem:[#allocation3 + $0x1a]]
    %v100 = vstv %s99
    %v101 = vmul.f32 %v98, %v100
    %v102 = vadd.f32 %v91, %v101
    %s103 = sld [smem:[#allocation3 + $0x7]]
    %v104 = vstv %s103
    %v105 = vmul.f32 %v26, %v104
    %s106 = sld [smem:[#allocation3 + $0x11]]
    %v107 = vstv %s106
    %v108 = vadd.f32 %v105, %v107
    %v109 = vmax.f32 %v108, 0.0
    %s110 = sld [smem:[#allocation3 + $0x1b]]
    %v111 = vstv %s110
    %v112 = vmul.f32 %v109, %v111
    %v113 = vadd.f32 %v102, %v112
    %s114 = sld [smem:[#allocation3 + $0x8]]
    %v115 = vstv %s114
    %v116 = vmul.f32 %v26, %v115
    %s117 = sld [smem:[#allocation3 + $0x12]]
    %v118 = vstv %s117
    %v119 = vadd.f32 %v116, %v118
    %v120 = vmax.f32 %v119, 0.0
    %s121 = sld [smem:[#allocation3 + $0x1c]]
    %v122 = vstv %s121
    %v123 = vmul.f32 %v120, %v122
    %v124 = vadd.f32 %v113, %v123
    %s125 = sld [smem:[#allocation3 + $0x9]]
    %v126 = vstv %s125
    %v127 = vmul.f32 %v26, %v126
    %s128 = sld [smem:[#allocation3 + $0x13]]
    %v129 = vstv %s128
    %v130 = vadd.f32 %v127, %v129
    %v131 = vmax.f32 %v130, 0.0
    %s132 = sld [smem:[#allocation3 + $0x1d]]
    %v133 = vstv %s132
    %v134 = vmul.f32 %v131, %v133
    %v135 = vadd.f32 %v124, %v134
    %s136 = sld [smem:[#allocation3 + $0x1e]]
    %s137 = smul.f32 %s136, 0.5
    %v138 = vmul.f32 %v135, 0.5
    %v139 = vstv %s137
    %v140 = vadd.f32 %v138, %v139
    %v141 = vtanh.pop %v140
    %v142 = vmul.f32 %v141, 0.5
    %v143 = vadd.f32 %v142, 0.5
    %144 = vst [vmem:[#allocation7] sm:$0xff] %v143
    // Predicated region
    $region10: #{tpu_custom_call.1} parent=1 // pred_check
      _
    $region11: #{tpu_custom_call.1} parent=1 // pred_check_branch
      %146 = sbr.rel (0) target = $region13
    $region12: #{tpu_custom_call.1} parent=1 // pred_region
      %s148 = ssub.s32 128, 128
      %149 = vsyncadd [#allocation6], %s148
      %s151 = sshll.u32 [#allocation7], 4
      %s152 = int_to_ptr.vmem [resolvable:$true] %s151
      %154 = dma.vmem_to_hbm [thread:$0]  %s152, 128, %s2, [#allocation6]
    $region13: #{tpu_custom_call.1} parent=1 // pred_fallthru
      _
    // Predicated region
    $region14: #{tpu_custom_call.1} parent=1 // pred_check
      _
    $region15: #{tpu_custom_call.1} parent=1 // pred_check_branch
      %156 = sbr.rel (0) target = $region17
    $region16: #{tpu_custom_call.1} parent=1 // pred_region
      %157 = dma.done [#allocation6], 128
    $region17: #{tpu_custom_call.1} parent=1 // pred_fallthru
      _
    %158 = vsyncpa [#allocation5], 1
    %159 = vsyncpa [#allocation6], 1

</llo_original>
